<compile_context>
chip_gen: v7x
topology: tpu7x:2x2x1
jax: 0.10.0
libtpu: 0.0.40
codegen_flags: <defaults>
</compile_context>

<pallas_src>
import jax
import jax.numpy as jnp
from jax.experimental import pallas as pl
from jax.experimental.pallas import tpu as pltpu


_TILE_M_CAP = 2048          # rows per full tile; each megacore half-step processes tile_m // 2
_VMEM_BUDGET = 36 << 20     # working-set budget, well under v7x's 64 MiB physical VMEM


def _round_up(x, m):
    return (x + m - 1) // m * m


def _bucket_rows(n):
    """Round a batch size up to a power of two (min 16) so shapes re-use jit/pallas compiles."""
    if n <= 16:
        return 16
    return 1 << (n - 1).bit_length()


def _vmem_bytes_estimate(tile_m, d_in, d_out):
    """Rough double-buffered VMEM footprint of one pipeline stage (lane-padded layout)."""
    half_m = tile_m // 2
    lanes = lambda c: max(128, _round_up(c, 128))
    x_tile = half_m * lanes(d_in) * 2          # bf16 input tile
    t_tile = half_m * lanes(d_out) * 4         # f32 target tile
    w_buf = _round_up(max(d_in, 16), 16) * lanes(d_out) * 2
    b_buf = 8 * lanes(d_out) * 4
    o_buf = 8 * lanes(d_out) * 4
    return 2 * (x_tile + t_tile) + 2 * (w_buf + b_buf + o_buf)


# ---------------------------------------------------------------------------
# Fused Pallas kernel: dense forward + masked per-scale SSE over a ragged concat.
# ---------------------------------------------------------------------------
def _multiscale_sse_kernel(tile_scale_ref, tile_local_ref, nrows_ref,
                           x_ref, w_ref, b_ref, t_ref, sse_ref):
    """One (row-half, flat-tile) grid step.

    tile_scale_ref : SMEM (n_tiles,)  int32  -- scale id of each flat row tile
    tile_local_ref : SMEM (n_tiles,)  int32  -- tile index within its scale
    nrows_ref      : SMEM (n_scales,) int32  -- true (unpadded) rows per scale
    x_ref          : VMEM (half_m, D)    bf16
    w_ref          : VMEM (D, DOUT)      bf16  (constant index_map -> resident)
    b_ref          : VMEM (1, DOUT)      f32   (constant index_map -> resident)
    t_ref          : VMEM (half_m, DOUT) f32
    sse_ref        : VMEM (8, DOUT_pad)  f32   -- this (scale, half)'s SSE accumulator block
    """
    half = pl.program_id(0)            # megacore row-half   ("parallel")
    ti = pl.program_id(1)              # flat row tile       ("arbitrary" reduction axis)

    s = tile_scale_ref[ti]             # which scale this tile belongs to
    local = tile_local_ref[ti]         # tile index within that scale

    half_m, d_out = t_ref.shape
    tile_m = 2 * half_m

    # First tile of a scale: zero this (scale, half) accumulator block.
    @pl.when(local == 0)
    def _init():
        sse_ref[...] = jnp.zeros_like(sse_ref)

    # Valid (non-padded) rows inside this half-tile.
    valid = nrows_ref[s] - local * tile_m - half * half_m

    @pl.when(valid > 0)                # skip compute entirely on fully-padded half-tiles
    def _compute():
        # model(x) = x @ W + b   (bf16 inputs, f32 accumulation on the MXU)
        pred = jnp.dot(x_ref[...], w_ref[...], preferred_element_type=jnp.float32)
        pred = pred + b_ref[...]
        diff = pred - t_ref[...]
        d2 = diff * diff

        @pl.when(valid >= half_m)      # full tile: no masking cost on the hot path
        def _full():
            sse_ref[0:1, :d_out] += jnp.sum(d2, axis=0, keepdims=True)

        @pl.when(valid < half_m)       # only each scale's last (partial) tile pays the mask
        def _partial():
            rows = jax.lax.broadcasted_iota(jnp.int32, d2.shape, 0)
            d2m = jnp.where(rows < valid, d2, 0.0)
            sse_ref[0:1, :d_out] += jnp.sum(d2m, axis=0, keepdims=True)


def _fused_multiscale_sse(tile_scale, tile_local, nrows, x_cat, w_bf16, b_row, t_cat,
                          tile_m, vmem_limit):
    """Returns per-(scale, half) partial-SSE blocks, shape (n_scales, 2, 8, DOUT_pad) f32."""
    n_scales = int(nrows.shape[0])
    d_in, d_out = w_bf16.shape
    half_m = tile_m // 2
    n_tiles = x_cat.shape[0] // tile_m
    dout_pad = max(128, _round_up(d_out, 128))

    cost = pl.CostEstimate(
        flops=2 * int(x_cat.shape[0]) * int(d_in) * int(d_out),
        transcendentals=0,
        bytes_accessed=(int(x_cat.size) * 2 + int(t_cat.size) * 4
                        + int(w_bf16.size) * 2 + int(b_row.size) * 4
                        + n_scales * 2 * 8 * dout_pad * 4))

    return pl.pallas_call(
        _multiscale_sse_kernel,
        out_shape=jax.ShapeDtypeStruct((n_scales, 2, 8, dout_pad), jnp.float32),
        grid_spec=pltpu.PrefetchScalarGridSpec(
            num_scalar_prefetch=3,                       # tile_scale, tile_local, nrows -> SMEM
            grid=(2, n_tiles),
            in_specs=[
                pl.BlockSpec((half_m, d_in), lambda h, t, *_: (2 * t + h, 0)),
                # W / b: constant index_map -> DMA'd once, resident across the whole grid.
                # TODO(synk): pipeline_mode=pl.Buffered(1) would drop their second buffer; it is
                # skipped (footprint is tiny here) to stay conservative across Pallas versions.
                pl.BlockSpec((d_in, d_out), lambda h, t, *_: (0, 0)),
                pl.BlockSpec((1, d_out), lambda h, t, *_: (0, 0)),
                pl.BlockSpec((half_m, d_out), lambda h, t, *_: (2 * t + h, 0)),
            ],
            out_specs=pl.BlockSpec((None, None, 8, dout_pad),
                                   lambda h, t, ts_ref, *_: (ts_ref[t], h, 0, 0)),
        ),
        compiler_params=pltpu.CompilerParams(
            dimension_semantics=("parallel", "arbitrary"),
            vmem_limit_bytes=vmem_limit),
        cost_estimate=cost,
    )(tile_scale, tile_local, nrows, x_cat, w_bf16, b_row, t_cat)


# ---------------------------------------------------------------------------
# Jitted device path: ragged concat, fused kernel, per-scale MSE, weighted total.
# ---------------------------------------------------------------------------
@jax.jit
def _multiscale_forward(w, b, xs, ts, nrows, scale_weights):
    d_in, d_out = w.shape

    max_nb = max(x.shape[0] for x in xs)
    tile_m = min(_TILE_M_CAP, max(32, 1 << (max_nb - 1).bit_length()))   # pow2, >=32
    while tile_m > 64 and _vmem_bytes_estimate(tile_m, d_in, d_out) > _VMEM_BUDGET:
        tile_m //= 2
    vmem_limit = int(min(48 << 20,
                         max(32 << 20,
                             _vmem_bytes_estimate(tile_m, d_in, d_out) + (8 << 20))))

    # Ragged concat: pad each scale only to its own tile boundary (not the global max).
    segs_x, segs_t, tile_scale, tile_local = [], [], [], []
    for i, (x, t) in enumerate(zip(xs, ts)):
        nb = x.shape[0]
        r = _round_up(nb, tile_m)
        segs_x.append(jnp.pad(x.astype(jnp.bfloat16), ((0, r - nb), (0, 0))))
        # TODO(synk): t could ship as bf16 to halve target HBM bytes if that precision is OK.
        segs_t.append(jnp.pad(t.astype(jnp.float32), ((0, r - nb), (0, 0))))
        n_t = r // tile_m
        tile_scale.extend([i] * n_t)
        tile_local.extend(range(n_t))
    x_cat = jnp.concatenate(segs_x, axis=0)
    t_cat = jnp.concatenate(segs_t, axis=0)
    tile_scale = jnp.asarray(tile_scale, dtype=jnp.int32)
    tile_local = jnp.asarray(tile_local, dtype=jnp.int32)

    out = _fused_multiscale_sse(
        tile_scale, tile_local, nrows.astype(jnp.int32),
        x_cat, w.astype(jnp.bfloat16),
        b.reshape(1, d_out).astype(jnp.float32), t_cat, tile_m, vmem_limit)

    sse = out.sum(axis=(1, 2, 3))                        # single post-kernel cross-lane reduce
    n_elem = jnp.maximum(nrows.astype(jnp.float32) * d_out, 1.0)   # guard empty scales (no NaN)
    scale_losses = sse / n_elem                          # per-scale MSE
    total_loss = jnp.dot(scale_losses, scale_weights.astype(jnp.float32))
    return total_loss, scale_losses


# ---------------------------------------------------------------------------
# MultiscaleLoss (JAX / Pallas port of the PyTorch module)
# ---------------------------------------------------------------------------
class MultiscaleLoss:
    def __init__(self, scale_weights=None, weight_decay=0.8, normalize_weights=True):
        self.scale_weights = scale_weights
        self.weight_decay = weight_decay
        self.normalize_weights = normalize_weights

    def generate_scale_weights(self, n_scales):
        if self.scale_weights is not None:
            w = jnp.asarray(self.scale_weights[:n_scales], dtype=jnp.float32)
        else:
            w = jnp.asarray(
                [self.weight_decay ** i for i in range(n_scales)], dtype=jnp.float32)
        if self.normalize_weights:
            w = w / jnp.sum(w)
        return w

    def forward(self, model_params, multiscale_batches, targets_list):
        n_scales = len(multiscale_batches)
        if n_scales == 0:
            raise RuntimeError("All multiscale loss computations failed")
        scale_weights = self.generate_scale_weights(n_scales)
        w, b = model_params

        # Bucket batch sizes (pow2, min 16) so varying sizes during training re-use compiles;
        # true row counts are carried separately and masked in-kernel, so results are exact.
        xs, ts, true_n = [], [], []
        for bd, tg in zip(multiscale_batches, targets_list):
            x = jnp.asarray(bd["x"])
            y = jnp.asarray(tg["y"])
            n = int(x.shape[0])
            nb = _bucket_rows(n)
            if nb != n:
                x = jnp.pad(x, ((0, nb - n), (0, 0)))
                y = jnp.pad(y, ((0, nb - n), (0, 0)))
            xs.append(x)
            ts.append(y)
            true_n.append(n)
        nrows = jnp.asarray(true_n, dtype=jnp.int32)

        # All device work in one jit call wrapping one fused Pallas kernel.
        total_loss, scale_losses = _multiscale_forward(
            w, b, tuple(xs), tuple(ts), nrows, scale_weights)
        # TODO(synk): pallas_call is not differentiable by default; add a custom_vjp
        # (or pure-JAX grad path) before using this loss under jax.grad.
        # TODO(synk): PyTorch wraps each scale in try/except + warnings.warn; per-scale
        # runtime-failure recovery has no in-kernel equivalent.

        # Single device->host sync for the bookkeeping dict (mirrors torch .item()).
        losses_h, weights_h, total_h = jax.device_get(
            (scale_losses, scale_weights, total_loss))

        scale_info = {}
        for i in range(n_scales):
            scale_info[f"scale_{i}"] = {
                "batch_size": true_n[i],
                "loss": float(losses_h[i]),
                "weight": float(weights_h[i]),
                "weighted_loss": float(weights_h[i] * losses_h[i]),
            }
        loss_info = {
            "total_loss": float(total_h),
            "n_scales": n_scales,
            "scale_weights": [float(v) for v in weights_h],
            "scales": scale_info,
        }
        return total_loss, loss_info


# ---------------------------------------------------------------------------
# Demo / self-check
# ---------------------------------------------------------------------------
if __name__ == "__main__":
    key = jax.random.PRNGKey(0)
    D, DOUT = 32, 16
    batch_sizes = [8, 4, 2]  # three scales, coarser scale -> fewer samples

    k_w, k_b, *k_scales = jax.random.split(key, 2 + len(batch_sizes))
    W = jax.random.normal(k_w, (D, DOUT), dtype=jnp.float32) * 0.1
    bvec = jax.random.normal(k_b, (DOUT,), dtype=jnp.float32) * 0.01

    multiscale_batches, targets_list = [], []
    for i, n in enumerate(batch_sizes):
        kx, kt = jax.random.split(k_scales[i])
        multiscale_batches.append({"x": jax.random.normal(kx, (n, D), dtype=jnp.float32)})
        targets_list.append({"y": jax.random.normal(kt, (n, DOUT), dtype=jnp.float32)})

    ms_loss = MultiscaleLoss(scale_weights=None, weight_decay=0.8, normalize_weights=True)
    total_loss, loss_info = ms_loss.forward((W, bvec), multiscale_batches, targets_list)
    total_loss = jax.block_until_ready(total_loss)

    # Pure-JAX reference (same bf16-input / f32-accumulation matmul as the kernel).
    ref_weights = ms_loss.generate_scale_weights(len(batch_sizes))
    ref_total = jnp.float32(0.0)
    for i in range(len(batch_sizes)):
        x = multiscale_batches[i]["x"]
        t = targets_list[i]["y"]
        pred = jnp.dot(x.astype(jnp.bfloat16), W.astype(jnp.bfloat16),
                       preferred_element_type=jnp.float32) + bvec
        ref_total = ref_total + ref_weights[i] * jnp.mean((pred - t) ** 2)
    assert jnp.allclose(total_loss, ref_total, rtol=2e-3, atol=1e-5), (
        float(total_loss), float(ref_total))
    assert loss_info["n_scales"] == len(batch_sizes)

    print("KERNEL_OK")
</pallas_src>

<mosaic_0001>
module attributes {stable_mosaic.version = 11 : i64} {
  func.func @_multiscale_sse_kernel(%arg0: i32, %arg1: i32, %arg2: memref<3xi32, #tpu.memory_space<smem>>, %arg3: memref<3xi32, #tpu.memory_space<smem>>, %arg4: memref<3xi32, #tpu.memory_space<smem>>, %arg5: memref<16x32xbf16, #tpu.memory_space<vmem>>, %arg6: memref<32x16xbf16, #tpu.memory_space<vmem>>, %arg7: memref<1x16xf32, #tpu.memory_space<vmem>>, %arg8: memref<16x16xf32, #tpu.memory_space<vmem>>, %arg9: memref<1x1x8x128xf32, #tpu.memory_space<vmem>>) attributes {dimension_semantics = [#tpu.dimension_semantics<parallel>, #tpu.dimension_semantics<arbitrary>], iteration_bounds = array<i64: 2, 3>, scalar_prefetch = 3 : i64, scratch_operands = 0 : i64, tpu.core_type = #tpu.core_type<tc>, window_params = [{transform_indices = @transform_0, window_bounds = array<i64: 16, 32>}, {pipeline_mode = #tpu.pipeline_mode<synchronous>, transform_indices = @transform_1, window_bounds = array<i64: 32, 16>}, {pipeline_mode = #tpu.pipeline_mode<synchronous>, transform_indices = @transform_2, window_bounds = array<i64: 1, 16>}, {transform_indices = @transform_3, window_bounds = array<i64: 16, 16>}, {transform_indices = @transform_4, window_bounds = array<i64: 1, 1, 8, 128>}]} {
    %0 = arith.index_cast %arg1 : i32 to index
    %1 = memref.load %arg2[%0] : memref<3xi32, #tpu.memory_space<smem>>
    %2 = arith.index_cast %arg1 : i32 to index
    %3 = memref.load %arg3[%2] : memref<3xi32, #tpu.memory_space<smem>>
    %c0_i32 = arith.constant 0 : i32
    %4 = arith.cmpi eq, %3, %c0_i32 : i32
    %5 = arith.extui %4 : i1 to i32
    %c0_i32_0 = arith.constant 0 : i32
    %6 = arith.cmpi ne, %5, %c0_i32_0 : i32
    scf.if %6 {
      %cst = arith.constant 0.000000e+00 : f32
      %16 = vector.broadcast %cst : f32 to vector<8x128xf32>
      %c0 = arith.constant 0 : index
      %c0_3 = arith.constant 0 : index
      %c0_4 = arith.constant 0 : index
      %c0_5 = arith.constant 0 : index
      %17 = vector.load %arg9[%c0, %c0_3, %c0_4, %c0_5] : memref<1x1x8x128xf32, #tpu.memory_space<vmem>>, vector<1x1x8x128xf32>
      %18 = vector.shape_cast %17 : vector<1x1x8x128xf32> to vector<8x128xf32>
      %19 = vector.shape_cast %16 : vector<8x128xf32> to vector<1x1x8x128xf32>
      tpu.vector_store %arg9[%c0, %c0_3, %c0_4, %c0_5], %19 {strides = array<i32>} : memref<1x1x8x128xf32, #tpu.memory_space<vmem>>, vector<1x1x8x128xf32>,
    } else {
    }
    %7 = arith.index_cast %1 : i32 to index
    %8 = memref.load %arg4[%7] : memref<3xi32, #tpu.memory_space<smem>>
    %c32_i32 = arith.constant 32 : i32
    %9 = arith.muli %3, %c32_i32 : i32
    %10 = arith.subi %8, %9 : i32
    %c16_i32 = arith.constant 16 : i32
    %11 = arith.muli %arg0, %c16_i32 : i32
    %12 = arith.subi %10, %11 : i32
    %c0_i32_1 = arith.constant 0 : i32
    %13 = arith.cmpi sgt, %12, %c0_i32_1 : i32
    %14 = arith.extui %13 : i1 to i32
    %c0_i32_2 = arith.constant 0 : i32
    %15 = arith.cmpi ne, %14, %c0_i32_2 : i32
    scf.if %15 {
      %c0 = arith.constant 0 : index
      %c0_3 = arith.constant 0 : index
      %16 = vector.load %arg5[%c0, %c0_3] : memref<16x32xbf16, #tpu.memory_space<vmem>>, vector<16x32xbf16>
      %c0_4 = arith.constant 0 : index
      %c0_5 = arith.constant 0 : index
      %17 = vector.load %arg6[%c0_4, %c0_5] : memref<32x16xbf16, #tpu.memory_space<vmem>>, vector<32x16xbf16>
      %cst = arith.constant dense<0.000000e+00> : vector<16x16xf32>
      %18 = tpu.matmul %16, %17, %cst {dimension_numbers = #tpu.dot_dimension_numbers<[1], [0], [0], [1], [0, 0, 1, 1], [], []>} : vector<16x32xbf16>, vector<32x16xbf16>, vector<16x16xf32> -> vector<16x16xf32>
      %c0_6 = arith.constant 0 : index
      %c0_7 = arith.constant 0 : index
      %19 = vector.load %arg7[%c0_6, %c0_7] : memref<1x16xf32, #tpu.memory_space<vmem>>, vector<1x16xf32>
      %20 = vector.broadcast %19 : vector<1x16xf32> to vector<16x16xf32>
      %21 = arith.addf %18, %20 : vector<16x16xf32>
      %c0_8 = arith.constant 0 : index
      %c0_9 = arith.constant 0 : index
      %22 = vector.load %arg8[%c0_8, %c0_9] : memref<16x16xf32, #tpu.memory_space<vmem>>, vector<16x16xf32>
      %23 = arith.subf %21, %22 : vector<16x16xf32>
      %24 = arith.mulf %23, %23 : vector<16x16xf32>
      %c16_i32_10 = arith.constant 16 : i32
      %25 = arith.cmpi sge, %12, %c16_i32_10 : i32
      %26 = arith.extui %25 : i1 to i32
      %c0_i32_11 = arith.constant 0 : i32
      %27 = arith.cmpi ne, %26, %c0_i32_11 : i32
      scf.if %27 {
        %c0_14 = arith.constant 0 : index
        %c0_15 = arith.constant 0 : index
        %c0_16 = arith.constant 0 : index
        %c0_17 = arith.constant 0 : index
        %31 = vector.load %arg9[%c0_14, %c0_15, %c0_16, %c0_17] : memref<1x1x8x128xf32, #tpu.memory_space<vmem>>, vector<1x1x1x16xf32>
        %32 = vector.shape_cast %31 : vector<1x1x1x16xf32> to vector<1x16xf32>
        %cst_18 = arith.constant dense<0.000000e+00> : vector<16xf32>
        %33 = vector.multi_reduction <add>, %24, %cst_18 [0] : vector<16x16xf32> to vector<16xf32>
        %34 = vector.shape_cast %33 : vector<16xf32> to vector<1x16xf32>
        %35 = arith.addf %32, %34 : vector<1x16xf32>
        %c0_19 = arith.constant 0 : index
        %c0_20 = arith.constant 0 : index
        %c0_21 = arith.constant 0 : index
        %c0_22 = arith.constant 0 : index
        %36 = vector.load %arg9[%c0_19, %c0_20, %c0_21, %c0_22] : memref<1x1x8x128xf32, #tpu.memory_space<vmem>>, vector<1x1x1x16xf32>
        %37 = vector.shape_cast %36 : vector<1x1x1x16xf32> to vector<1x16xf32>
        %38 = vector.shape_cast %35 : vector<1x16xf32> to vector<1x1x1x16xf32>
        tpu.vector_store %arg9[%c0_19, %c0_20, %c0_21, %c0_22], %38 {strides = array<i32>} : memref<1x1x8x128xf32, #tpu.memory_space<vmem>>, vector<1x1x1x16xf32>,
      } else {
      }
      %c16_i32_12 = arith.constant 16 : i32
      %28 = arith.cmpi slt, %12, %c16_i32_12 : i32
      %29 = arith.extui %28 : i1 to i32
      %c0_i32_13 = arith.constant 0 : i32
      %30 = arith.cmpi ne, %29, %c0_i32_13 : i32
      scf.if %30 {
        %31 = tpu.iota {dimensions = array<i32: 0>} : vector<16x16xi32>
        %32 = vector.broadcast %12 : i32 to vector<16x16xi32>
        %33 = arith.cmpi slt, %31, %32 : vector<16x16xi32>
        %cst_14 = arith.constant 0.000000e+00 : f32
        %34 = vector.broadcast %cst_14 : f32 to vector<16x16xf32>
        %35 = arith.select %33, %24, %34 : vector<16x16xi1>, vector<16x16xf32>
        %c0_15 = arith.constant 0 : index
        %c0_16 = arith.constant 0 : index
        %c0_17 = arith.constant 0 : index
        %c0_18 = arith.constant 0 : index
        %36 = vector.load %arg9[%c0_15, %c0_16, %c0_17, %c0_18] : memref<1x1x8x128xf32, #tpu.memory_space<vmem>>, vector<1x1x1x16xf32>
        %37 = vector.shape_cast %36 : vector<1x1x1x16xf32> to vector<1x16xf32>
        %cst_19 = arith.constant dense<0.000000e+00> : vector<16xf32>
        %38 = vector.multi_reduction <add>, %35, %cst_19 [0] : vector<16x16xf32> to vector<16xf32>
        %39 = vector.shape_cast %38 : vector<16xf32> to vector<1x16xf32>
        %40 = arith.addf %37, %39 : vector<1x16xf32>
        %c0_20 = arith.constant 0 : index
        %c0_21 = arith.constant 0 : index
        %c0_22 = arith.constant 0 : index
        %c0_23 = arith.constant 0 : index
        %41 = vector.load %arg9[%c0_20, %c0_21, %c0_22, %c0_23] : memref<1x1x8x128xf32, #tpu.memory_space<vmem>>, vector<1x1x1x16xf32>
        %42 = vector.shape_cast %41 : vector<1x1x1x16xf32> to vector<1x16xf32>
        %43 = vector.shape_cast %40 : vector<1x16xf32> to vector<1x1x1x16xf32>
        tpu.vector_store %arg9[%c0_20, %c0_21, %c0_22, %c0_23], %43 {strides = array<i32>} : memref<1x1x8x128xf32, #tpu.memory_space<vmem>>, vector<1x1x1x16xf32>,
      } else {
      }
    } else {
    }
    return
  }
  func.func @transform_0(%arg0: i32, %arg1: i32, %arg2: memref<3xi32, #tpu.memory_space<smem>>, %arg3: memref<3xi32, #tpu.memory_space<smem>>, %arg4: memref<3xi32, #tpu.memory_space<smem>>) -> (i32, i32) {
    %c2_i32 = arith.constant 2 : i32
    %0 = arith.muli %c2_i32, %arg1 : i32
    %1 = arith.addi %0, %arg0 : i32
    %c0_i32 = arith.constant 0 : i32
    %c0_i32_0 = arith.constant 0 : i32
    return %1, %c0_i32 : i32, i32
  }
  func.func @transform_1(%arg0: i32, %arg1: i32, %arg2: memref<3xi32, #tpu.memory_space<smem>>, %arg3: memref<3xi32, #tpu.memory_space<smem>>, %arg4: memref<3xi32, #tpu.memory_space<smem>>) -> (i32, i32) {
    %c0_i32 = arith.constant 0 : i32
    %c0_i32_0 = arith.constant 0 : i32
    %c0_i32_1 = arith.constant 0 : i32
    return %c0_i32, %c0_i32_0 : i32, i32
  }
  func.func @transform_2(%arg0: i32, %arg1: i32, %arg2: memref<3xi32, #tpu.memory_space<smem>>, %arg3: memref<3xi32, #tpu.memory_space<smem>>, %arg4: memref<3xi32, #tpu.memory_space<smem>>) -> (i32, i32) {
    %c0_i32 = arith.constant 0 : i32
    %c0_i32_0 = arith.constant 0 : i32
    %c0_i32_1 = arith.constant 0 : i32
    return %c0_i32, %c0_i32_0 : i32, i32
  }
  func.func @transform_3(%arg0: i32, %arg1: i32, %arg2: memref<3xi32, #tpu.memory_space<smem>>, %arg3: memref<3xi32, #tpu.memory_space<smem>>, %arg4: memref<3xi32, #tpu.memory_space<smem>>) -> (i32, i32) {
    %c2_i32 = arith.constant 2 : i32
    %0 = arith.muli %c2_i32, %arg1 : i32
    %1 = arith.addi %0, %arg0 : i32
    %c0_i32 = arith.constant 0 : i32
    %c0_i32_0 = arith.constant 0 : i32
    return %1, %c0_i32 : i32, i32
  }
  func.func @transform_4(%arg0: i32, %arg1: i32, %arg2: memref<3xi32, #tpu.memory_space<smem>>, %arg3: memref<3xi32, #tpu.memory_space<smem>>, %arg4: memref<3xi32, #tpu.memory_space<smem>>) -> (i32, i32, i32, i32) {
    %0 = arith.index_cast %arg1 : i32 to index
    %1 = memref.load %arg2[%0] : memref<3xi32, #tpu.memory_space<smem>>
    %c0_i32 = arith.constant 0 : i32
    %c0_i32_0 = arith.constant 0 : i32
    %c0_i32_1 = arith.constant 0 : i32
    return %1, %arg0, %c0_i32, %c0_i32_0 : i32, i32, i32, i32
  }
}

</mosaic_0001>

<llo_original>
// kernel: _multiscale_forward.1
$region0: #{_multiscale_forward.1}
  #allocation0 [shape = 'u32[]', space=smem, size = 0x4, offset = 0x4, fixed_abs, tag = 'smem constant byte address 0x4 - core index']
  #allocation1 [shape = 'u32[144,128]{1,0:T(1,128)}', space=vmem, size = 0x12000, scoped, tag = 'internal scratch']
  #allocation2 [shape = 's32[1]{0}', space=sflag, size = 0x4, scoped, tag = 'scoped memory for _multiscale_forward.1']
  #allocation3 [shape = 'u8[512]{0}', space=smem, size = 0x200, scoped, tag = 'prefetched SMEM operand 0']
  #allocation4 [shape = 'u8[512]{0}', space=smem, size = 0x200, scoped, tag = 'prefetched SMEM operand 1']
  #allocation5 [shape = 'u8[512]{0}', space=smem, size = 0x200, scoped, tag = 'prefetched SMEM operand 2']
  %s0 = inlined_call_operand.vmem [shape: s32[3], index: 0, kind: input, shape index: {}]
  %s1 = inlined_call_operand.vmem [shape: s32[3], index: 1, kind: input, shape index: {}]
  %s2 = inlined_call_operand.vmem [shape: s32[3], index: 2, kind: input, shape index: {}]
  %s3 = inlined_call_operand.vmem [shape: bf16[96,32], index: 3, kind: input, shape index: {}]
  %s4 = inlined_call_operand.vmem [shape: bf16[32,16], index: 4, kind: input, shape index: {}]
  %s5 = inlined_call_operand.vmem [shape: f32[1,16], index: 5, kind: input, shape index: {}]
  %s6 = inlined_call_operand.vmem [shape: f32[96,16], index: 6, kind: input, shape index: {}]
  %s7 = inlined_call_operand.vmem [shape: f32[3,2,8,128], index: 7, kind: output, shape index: {}]
  %s8 = sld [smem:[#allocation0]]
  $region65: #{_multiscale_forward.1} parent=0
    _
  %s10 = ssub.s32 1, %s8
  %s11 = scalar_select 0, %s10, %s8
  %s12 = sshll.u32 %s0, 4
  %s13 = int_to_ptr.vmem [resolvable:$true] %s12
  %15 = dma.vmem_to_smem %s13, 16, [#allocation3], [#allocation2]
  %s16 = sshll.u32 %s1, 4
  %s17 = int_to_ptr.vmem [resolvable:$true] %s16
  %19 = dma.vmem_to_smem %s17, 16, [#allocation4], [#allocation2]
  %s20 = sshll.u32 %s2, 4
  %s21 = int_to_ptr.vmem [resolvable:$true] %s20
  %23 = dma.vmem_to_smem %s21, 16, [#allocation5], [#allocation2]
  %24 = dma.done [#allocation2], 48
  %25 = sfence
  loop: start=0, step=1, limit=8
  $region2: #{_multiscale_forward.1} parent=0 // loop_pre_header
    _
  $region3: #{_multiscale_forward.1} parent=0 // loop_header
    %s27 = sphi 0, %s31
    %p28 = scmp.ge.s32.totalorder %s27, 8
    %s34 = sphi 0, %s46
    %s35 = sphi 0, %s42
    %s36 = sphi 0, %s34
    %s37 = sphi 0, %s35
    %s38 = sphi 0, %s36
    %s39 = sphi 0, %s37
    %s53 = sphi 0, %s55
    %s56 = sphi 0, %s53
    %s57 = sphi 0, %s56
    %s73 = sphi 0, %s57
    %s77 = sphi 0, %s77
    %s79 = sphi 0, %s77
    %s80 = sphi 0, %s79
    %s94 = sphi 0, %s80
    %s98 = sphi 0, %s98
    %s100 = sphi 0, %s98
    %s101 = sphi 0, %s100
    %s115 = sphi 0, %s101
    %s125 = sphi 0, %s127
    %s128 = sphi 0, %s125
    %s129 = sphi 0, %s128
    %s145 = sphi 0, %s129
    %s155 = sphi 0, %s157
    %s158 = sphi 0, %s155
    %s159 = sphi 0, %s158
    %s175 = sphi 0, %s159
  $region4: #{_multiscale_forward.1} parent=0 // loop_header_branch
    %30 = sbr.rel (%p28) target = $region8
  $region5: #{_multiscale_forward.1} parent=0 // loop_body
    %s32 = ssub.s32 %s27, 1
    %s33 = ssub.s32 %s27, 2
    %s40 = sadd.s32 1, %s35
    %p41 = scmp.ge.s32.totalorder %s40, 3
    %s42 = scalar_select %p41, 0, %s40
    %s43 = sadd.s32 1, %s34
    %s44 = scalar_select %p41, %s43, %s34
    %p45 = scmp.ge.s32.totalorder %s44, 2
    %s46 = scalar_select %p45, 0, %s44
    %s47 = smul.u32 %s35, 2
    %s48 = sadd.s32 %s47, %s34
    %s49 = smul.u32 %s42, 2
    %s50 = sadd.s32 %s49, %s46
    %s51 = ssub.s32 %s48, %s50
    %p52 = scmp.eq.s32.totalorder %s51, 0
    %s54 = sadd.s32 %s53, 1
    %s55 = scalar_select %p52, %s53, %s54
    %p58 = pneg %p52
    %p59 = scmp.eq.s32.totalorder %s27, 5
    %p60 = por %p58, %p59
    %p61 = scmp.ne.s32.totalorder %s53, %s56
    %p62 = scmp.eq.s32.totalorder %s27, 0
    %p63 = por %p61, %p62
    %p64 = scmp.ne.s32.totalorder %s53, %s56
    %p65 = scmp.eq.s32.totalorder %s32, 5
    %p66 = por %p64, %p65
    %p67 = scmp.ne.s32.totalorder %s56, %s57
    %p68 = scmp.eq.s32.totalorder %s32, 0
    %p69 = por %p67, %p68
    %p70 = scmp.ne.s32.totalorder %s56, %s57
    %p71 = scmp.eq.s32.totalorder %s33, 5
    %p72 = por %p70, %p71
    %p74 = scmp.ne.s32.totalorder %s57, %s73
    %p75 = scmp.eq.s32.totalorder %s33, 0
    %p76 = por %p74, %p75
    %s78 = sadd.s32 %s77, 1
    %p81 = scmp.eq.s32.totalorder %s27, 5
    %p82 = scmp.ne.s32.totalorder %s77, %s79
    %p83 = scmp.eq.s32.totalorder %s27, 0
    %p84 = por %p82, %p83
    %p85 = scmp.ne.s32.totalorder %s77, %s79
    %p86 = scmp.eq.s32.totalorder %s32, 5
    %p87 = por %p85, %p86
    %p88 = scmp.ne.s32.totalorder %s79, %s80
    %p89 = scmp.eq.s32.totalorder %s32, 0
    %p90 = por %p88, %p89
    %p91 = scmp.ne.s32.totalorder %s79, %s80
    %p92 = scmp.eq.s32.totalorder %s33, 5
    %p93 = por %p91, %p92
    %p95 = scmp.ne.s32.totalorder %s80, %s94
    %p96 = scmp.eq.s32.totalorder %s33, 0
    %p97 = por %p95, %p96
    %s99 = sadd.s32 %s98, 1
    %p102 = scmp.eq.s32.totalorder %s27, 5
    %p103 = scmp.ne.s32.totalorder %s98, %s100
    %p104 = scmp.eq.s32.totalorder %s27, 0
    %p105 = por %p103, %p104
    %p106 = scmp.ne.s32.totalorder %s98, %s100
    %p107 = scmp.eq.s32.totalorder %s32, 5
    %p108 = por %p106, %p107
    %p109 = scmp.ne.s32.totalorder %s100, %s101
    %p110 = scmp.eq.s32.totalorder %s32, 0
    %p111 = por %p109, %p110
    %p112 = scmp.ne.s32.totalorder %s100, %s101
    %p113 = scmp.eq.s32.totalorder %s33, 5
    %p114 = por %p112, %p113
    %p116 = scmp.ne.s32.totalorder %s101, %s115
    %p117 = scmp.eq.s32.totalorder %s33, 0
    %p118 = por %p116, %p117
    %s119 = smul.u32 %s35, 2
    %s120 = sadd.s32 %s119, %s34
    %s121 = smul.u32 %s42, 2
    %s122 = sadd.s32 %s121, %s46
    %s123 = ssub.s32 %s120, %s122
    %p124 = scmp.eq.s32.totalorder %s123, 0
    %s126 = sadd.s32 %s125, 1
    %s127 = scalar_select %p124, %s125, %s126
    %p130 = pneg %p124
    %p131 = scmp.eq.s32.totalorder %s27, 5
    %p132 = por %p130, %p131
    %p133 = scmp.ne.s32.totalorder %s125, %s128
    %p134 = scmp.eq.s32.totalorder %s27, 0
    %p135 = por %p133, %p134
    %p136 = scmp.ne.s32.totalorder %s125, %s128
    %p137 = scmp.eq.s32.totalorder %s32, 5
    %p138 = por %p136, %p137
    %p139 = scmp.ne.s32.totalorder %s128, %s129
    %p140 = scmp.eq.s32.totalorder %s32, 0
    %p141 = por %p139, %p140
    %p142 = scmp.ne.s32.totalorder %s128, %s129
    %p143 = scmp.eq.s32.totalorder %s33, 5
    %p144 = por %p142, %p143
    %p146 = scmp.ne.s32.totalorder %s129, %s145
    %p147 = scmp.eq.s32.totalorder %s33, 0
    %p148 = por %p146, %p147
    %s149 = sld [smem:[#allocation3 + %s35]]
    %s150 = sld [smem:[#allocation3 + %s42]]
    %s151 = ssub.s32 %s149, %s150
    %s152 = ssub.s32 %s34, %s46
    %s153 = sor.u32 %s151, %s152
    %p154 = scmp.eq.s32.totalorder %s153, 0
    %s156 = sadd.s32 %s155, 1
    %s157 = scalar_select %p154, %s155, %s156
    %p160 = pneg %p154
    %p161 = scmp.eq.s32.totalorder %s27, 5
    %p162 = por %p160, %p161
    %p163 = scmp.ne.s32.totalorder %s155, %s158
    %p164 = scmp.eq.s32.totalorder %s27, 0
    %p165 = por %p163, %p164
    %p166 = scmp.ne.s32.totalorder %s155, %s158
    %p167 = scmp.eq.s32.totalorder %s32, 5
    %p168 = por %p166, %p167
    %p169 = scmp.ne.s32.totalorder %s158, %s159
    %p170 = scmp.eq.s32.totalorder %s32, 0
    %p171 = por %p169, %p170
    %p172 = scmp.ne.s32.totalorder %s158, %s159
    %p173 = scmp.eq.s32.totalorder %s33, 5
    %p174 = por %p172, %p173
    %p176 = scmp.ne.s32.totalorder %s159, %s175
    %p177 = scmp.eq.s32.totalorder %s33, 0
    %p178 = por %p176, %p177
    %p179 = scmp.le.s32.totalorder 1, %s27
    %p180 = scmp.lt.s32.totalorder %s27, 7
    %p181 = pnand %p179, %p180
    %p182 = pneg %p181
    // Predicated region
    $region9: #{_multiscale_forward.1} parent=5 // pred_check
      _
    $region10: #{_multiscale_forward.1} parent=5 // pred_check_branch
      %184 = sbr.rel (%p181) target = $region12
    $region11: #{_multiscale_forward.1} parent=5 // pred_region
      %s185 = ssub.s32 %s27, 1
      // Predicated region
      $region13: #{_multiscale_forward.1} parent=11 // pred_check
        %p186 = pneg %p90
      $region14: #{_multiscale_forward.1} parent=11 // pred_check_branch
        %188 = sbr.rel (%p186) target = $region16
      $region15: #{_multiscale_forward.1} parent=11 // pred_region
        _
      $region16: #{_multiscale_forward.1} parent=11 // pred_fallthru
        _
      // Predicated region
      $region17: #{_multiscale_forward.1} parent=11 // pred_check
        %p189 = pneg %p111
      $region18: #{_multiscale_forward.1} parent=11 // pred_check_branch
        %191 = sbr.rel (%p189) target = $region20
      $region19: #{_multiscale_forward.1} parent=11 // pred_region
        _
      $region20: #{_multiscale_forward.1} parent=11 // pred_fallthru
        _
    $region12: #{_multiscale_forward.1} parent=5 // pred_fallthru
      _
    %p192 = scmp.lt.s32.totalorder %s27, 6
    // Predicated region
    $region21: #{_multiscale_forward.1} parent=5 // pred_check
      %p193 = pneg %p192
    $region22: #{_multiscale_forward.1} parent=5 // pred_check_branch
      %195 = sbr.rel (%p193) target = $region24
    $region23: #{_multiscale_forward.1} parent=5 // pred_region
      // Predicated region
      $region25: #{_multiscale_forward.1} parent=23 // pred_check
        %p196 = pneg %p63
      $region26: #{_multiscale_forward.1} parent=23 // pred_check_branch
        %198 = sbr.rel (%p196) target = $region28
      $region27: #{_multiscale_forward.1} parent=23 // pred_region
        %s199 = smul.u32 %s35, 2
        %s200 = sadd.s32 %s199, %s34
        %s201 = smul.u32 2, %s200
        %p202 = scmp.lt.s32.totalorder %s201, 11
        %s203 = scalar_select %p202, %s201, 11
        %s204 = smul.addr %s203, 4
        %s205 = scalar_lea.vmem %s3, %s204
        %s206 = smul.u32 %s35, 2
        %s207 = sadd.s32 %s206, %s34
        %s208 = smul.u32 2, %s207
      $region28: #{_multiscale_forward.1} parent=23 // pred_fallthru
        _
      // Predicated region
      $region29: #{_multiscale_forward.1} parent=23 // pred_check
        %p209 = pneg %p135
      $region30: #{_multiscale_forward.1} parent=23 // pred_check_branch
        %211 = sbr.rel (%p209) target = $region32
      $region31: #{_multiscale_forward.1} parent=23 // pred_region
        %s212 = smul.u32 %s35, 2
        %s213 = sadd.s32 %s212, %s34
        %s214 = smul.u32 2, %s213
        %p215 = scmp.lt.s32.totalorder %s214, 11
        %s216 = scalar_select %p215, %s214, 11
        %s217 = smul.addr %s216, 8
        %s218 = scalar_lea.vmem %s6, %s217
        %s219 = smul.u32 %s35, 2
        %s220 = sadd.s32 %s219, %s34
        %s221 = smul.u32 2, %s220
      $region32: #{_multiscale_forward.1} parent=23 // pred_fallthru
        _
    $region24: #{_multiscale_forward.1} parent=5 // pred_fallthru
      _
    %p222 = scmp.le.s32.totalorder 1, %s27
    %p223 = scmp.lt.s32.totalorder %s27, 7
    %p224 = pnand %p222, %p223
    %p225 = pneg %p224
    // Predicated region
    $region33: #{_multiscale_forward.1} parent=5 // pred_check
      _
    $region34: #{_multiscale_forward.1} parent=5 // pred_check_branch
      %227 = sbr.rel (%p224) target = $region36
    $region35: #{_multiscale_forward.1} parent=5 // pred_region
      %s228 = ssub.s32 %s27, 1
      %s229 = smul.u32 %s37, 2
      %s230 = sadd.s32 %s229, %s36
      %s231 = smul.u32 2, %s230
      %p232 = scmp.lt.s32.totalorder %s231, 11
      %s233 = scalar_select %p232, %s231, 11
      %s234 = smul.addr %s233, 4
      %s235 = scalar_lea.vmem %s3, %s234
      %p236 = pneg %p69
      %p237 = pneg %p66
      %p238 = pneg %p90
      %p239 = pneg %p87
      %p240 = pneg %p111
      %p241 = pneg %p108
      %s242 = smul.u32 %s37, 2
      %s243 = sadd.s32 %s242, %s36
      %s244 = smul.u32 2, %s243
      %p245 = scmp.lt.s32.totalorder %s244, 11
      %s246 = scalar_select %p245, %s244, 11
      %s247 = smul.addr %s246, 8
      %s248 = scalar_lea.vmem %s6, %s247
      %p249 = pneg %p141
      %p250 = pneg %p138
      %p251 = pneg %p171
      %p252 = pneg %p168
      %s253 = sld [smem:[#allocation3 + %s37]]
      %p254 = scmp.lt.s32.totalorder %s253, 2
      %s255 = scalar_select %p254, %s253, 2
      %p256 = scmp.lt.s32.totalorder %s36, 1
      %s257 = scalar_select %p256, %s36, 1
      %s258 = smul.addr %s255, 2
      %s259 = sadd.s32 %s257, %s258
      %s260 = smul.addr %s259, 8
      %s261 = scalar_lea.vmem %s7, %s260
      %s262 = smul.u32 %s37, 2
      %s263 = sadd.s32 %s262, %s36
      %s264 = smul.u32 2, %s263
      %p265 = scmp.lt.s32.totalorder %s264, 11
      %s266 = scalar_select %p265, %s264, 11
      %s267 = smul.addr %s266, 4
      %s268 = scalar_lea.vmem %s3, %s267
      %s269 = smul.u32 %s37, 2
      %s270 = sadd.s32 %s269, %s36
      %s271 = smul.u32 2, %s270
      %s272 = smul.u32 %s37, 2
      %s273 = sadd.s32 %s272, %s36
      %s274 = smul.u32 2, %s273
      %p275 = scmp.lt.s32.totalorder %s274, 11
      %s276 = scalar_select %p275, %s274, 11
      %s277 = smul.addr %s276, 8
      %s278 = scalar_lea.vmem %s6, %s277
      %s279 = smul.u32 %s37, 2
      %s280 = sadd.s32 %s279, %s36
      %s281 = smul.u32 2, %s280
      %s282 = sld [smem:[#allocation3 + %s37]]
      %p283 = scmp.lt.s32.totalorder %s282, 2
      %s284 = scalar_select %p283, %s282, 2
      %p285 = scmp.lt.s32.totalorder %s36, 1
      %s286 = scalar_select %p285, %s36, 1
      %s287 = smul.addr %s284, 2
      %s288 = sadd.s32 %s286, %s287
      %s289 = smul.addr %s288, 8
      %s290 = scalar_lea.vmem %s7, %s289
      %s291 = sld [smem:[#allocation3 + %s37]]
      %s293 = sld [smem:[#allocation3 + %s37]]
      %s294 = sld [smem:[#allocation4 + %s37]]
      %p295 = scmp.eq.s32.totalorder %s294, 0
      // Predicated region
      $region37: #{_multiscale_forward.1} parent=35 // pred_check
        %p296 = pneg %p295
      $region38: #{_multiscale_forward.1} parent=35 // pred_check_branch
        %298 = sbr.rel (%p296) target = $region40
      $region39: #{_multiscale_forward.1} parent=35 // pred_region
        %299 = vst [vmem:[%s290] sm:$0xff] 0.0
      $region40: #{_multiscale_forward.1} parent=35 // pred_fallthru
        _
      %s300 = sld [smem:[#allocation5 + %s293]]
      %s301 = smul.u32 %s294, 32
      %s302 = ssub.s32 %s300, %s301
      %s303 = smul.u32 %s36, 16
      %s304 = ssub.s32 %s302, %s303
      %p305 = scmp.gt.s32.totalorder %s304, 0
      // Predicated region
      $region41: #{_multiscale_forward.1} parent=35 // pred_check
        %p306 = pneg %p305
      $region42: #{_multiscale_forward.1} parent=35 // pred_check_branch
        %308 = sbr.rel (%p306) target = $region44
      $region43: #{_multiscale_forward.1} parent=35 // pred_region
        %v309 = vld [vmem:[%s268] sm:$0xf]
        %v310 = vld [vmem:[%s268 + $0x4] sm:$0xf]
        %v311 = vld [vmem:[%s4] sm:$0xf]
        %v312 = vld [vmem:[%s4 + $0x4] sm:$0xf]
        %v313 = vld [vmem:[%s4 + $0x8] sm:$0xf]
        %v314 = vld [vmem:[%s4 + $0xc] sm:$0xf]
        %v315 = vld [vmem:[%s5] sm:$0x1]
        %v317 = vlaneseq
        %v318 = vshrl.u32 %v317, 7
        %v319 = vsub.s32 0, %v318
        %v320 = vrot.slane %v315, %v319
        %v324 = vunpack.c.l.b16 %v309
        %v325 = vunpack.c.l.b16 %v310
        %v326 = vpack.c.b16 %v325, %v324
        %v331 = vunpack.c.l.b16 %v311
        %v332 = vunpack.c.l.b16 %v312
        %v333 = vunpack.c.l.b16 %v313
        %v334 = vunpack.c.l.b16 %v314
        %v335 = vpack.c.b16 %v332, %v331
        %v336 = vpack.c.b16 %v334, %v333
        %vm339 = vcmask 261120
        %v341 = vsel %vm339, %v326, 0
        %343 = vmatprep.subr.bf16.mxu0 0
        %344 = vmatpush1.bf16.msra.mxu0 %v335
        %345 = vmatprep.subr.bf16.mxu0 0
        %346 = vmatpush1.bf16.msra.mxu0 %v336
        %347 = vmatprep.subr.bf16.mxu0 0
        %348 = vmatpush1.bf16.msra.mxu0 0
        %349 = vmatprep.subr.bf16.mxu0 0
        %350 = vmatpush1.bf16.msra.mxu0 0
        %351 = vmatprep.subr.bf16.mxu0 0
        %352 = vmatpush1.bf16.msra.mxu0 0
        %353 = vmatprep.subr.bf16.mxu0 0
        %354 = vmatpush1.bf16.msra.mxu0 0
        %355 = vmatprep.subr.bf16.mxu0 0
        %356 = vmatpush1.bf16.msra.mxu0 0
        %357 = vmatprep.subr.bf16.mxu0 0
        %358 = vmatpush1.bf16.msra.mxu0 0
        %359 = vmatprep.subr.bf16.mxu0 0
        %360 = vmatpush1.bf16.msra.mxu0 0
        %361 = vmatprep.subr.bf16.mxu0 0
        %362 = vmatpush1.bf16.msra.mxu0 0
        %363 = vmatprep.subr.bf16.mxu0 0
        %364 = vmatpush1.bf16.msra.mxu0 0
        %365 = vmatprep.subr.bf16.mxu0 0
        %366 = vmatpush1.bf16.msra.mxu0 0
        %367 = vmatprep.subr.bf16.mxu0 0
        %368 = vmatpush1.bf16.msra.mxu0 0
        %369 = vmatprep.subr.bf16.mxu0 0
        %370 = vmatpush1.bf16.msra.mxu0 0
        %371 = vmatprep.subr.bf16.mxu0 0
        %372 = vmatpush1.bf16.msra.mxu0 0
        %373 = vmatprep.subr.bf16.mxu0 0
        %374 = vmatpush1.bf16.msra.mxu0 0
        %375 = vmatprep.mubr.bf16.mxu0 0
        %376 = vmatmul.mubr.bf16.gmra.mrb[0].mxu0 %v341
        %v377 = vpop.f32.mrb[0].mxu0
        %v378 = vadd.f32 %v320, %v377
        %v379 = vpop.f32.mrb[0].mxu0
        %v380 = vpop.f32.mrb[0].mxu0
        %v381 = vadd.f32 %v320, %v380
        %v382 = vpop.f32.mrb[0].mxu0
        %383 = vdwg.mxu0
        %v384 = vld [vmem:[%s278] sm:$0xff]
        %v385 = vld [vmem:[%s278 + $0x8] sm:$0xff]
        %v386 = vsub.f32 %v378, %v384
        %v387 = vsub.f32 %v381, %v385
        %v388 = vmul.f32 %v386, %v386
        %v389 = vmul.f32 %v387, %v387
        %p390 = scmp.ge.s32.totalorder %s304, 16
        // Predicated region
        $region45: #{_multiscale_forward.1} parent=43 // pred_check
          %p391 = pneg %p390
        $region46: #{_multiscale_forward.1} parent=43 // pred_check_branch
          %393 = sbr.rel (%p391) target = $region48
        $region47: #{_multiscale_forward.1} parent=43 // pred_region
          %v394 = vld [vmem:[%s290] sm:$0x1]
          %vm395 = vcmask 130048
          %v396 = vsel %vm395, %v388, 0.0
          %v397 = vsel %vm395, %v389, 0.0
          %v398 = vadd.f32 %v396, %v397
          %v399 = vrot.slane %v398, 4
          %v400 = vadd.f32 %v398, %v399
          %v401 = vrot.slane %v400, 2
          %v402 = vadd.f32 %v400, %v401
          %v403 = vrot.slane %v402, 1
          %v404 = vadd.f32 %v402, %v403
          %v405 = vadd.f32 %v394, %v404
          %vm406 = vcmask 122880
          %407 = vst.msk [vmem:[%s290] sm:$0x1] %vm406, %v405
        $region48: #{_multiscale_forward.1} parent=43 // pred_fallthru
          _
        %p408 = scmp.lt.s32.totalorder %s304, 16
        // Predicated region
        $region49: #{_multiscale_forward.1} parent=43 // pred_check
          %p409 = pneg %p408
        $region50: #{_multiscale_forward.1} parent=43 // pred_check_branch
          %411 = sbr.rel (%p409) target = $region52
        $region51: #{_multiscale_forward.1} parent=43 // pred_region
          %v412 = vlaneseq
          %v413 = vshrl.u32 %v412, 7
          %v414 = vadd.s32 %v413, 8
          %v415 = vstv %s304
          %vm416 = vcmp.lt.s32.totalorder %v413, %v415
          %vm417 = vcmp.lt.s32.totalorder %v414, %v415
          %v418 = vsel %vm416, %v388, 0.0
          %v419 = vsel %vm417, %v389, 0.0
          %v420 = vld [vmem:[%s290] sm:$0x1]
          %vm421 = vcmask 130048
          %v422 = vsel %vm421, %v418, 0.0
          %v423 = vsel %vm421, %v419, 0.0
          %v424 = vadd.f32 %v422, %v423
          %v425 = vrot.slane %v424, 4
          %v426 = vadd.f32 %v424, %v425
          %v427 = vrot.slane %v426, 2
          %v428 = vadd.f32 %v426, %v427
          %v429 = vrot.slane %v428, 1
          %v430 = vadd.f32 %v428, %v429
          %v431 = vadd.f32 %v420, %v430
          %vm432 = vcmask 122880
          %433 = vst.msk [vmem:[%s290] sm:$0x1] %vm432, %v431
        $region52: #{_multiscale_forward.1} parent=43 // pred_fallthru
          _
      $region44: #{_multiscale_forward.1} parent=35 // pred_fallthru
        _
      %s434 = sld [smem:[#allocation3 + %s37]]
      %p435 = scmp.lt.s32.totalorder %s434, 2
      %s436 = scalar_select %p435, %s434, 2
      %p437 = scmp.lt.s32.totalorder %s36, 1
      %s438 = scalar_select %p437, %s36, 1
      %s439 = smul.addr %s436, 2
      %s440 = sadd.s32 %s438, %s439
      %s441 = smul.addr %s440, 8
      %s442 = scalar_lea.vmem %s7, %s441
      // Predicated region
      $region53: #{_multiscale_forward.1} parent=35 // pred_check
        %p443 = pneg %p168
      $region54: #{_multiscale_forward.1} parent=35 // pred_check_branch
        %445 = sbr.rel (%p443) target = $region56
      $region55: #{_multiscale_forward.1} parent=35 // pred_region
        %s446 = sld [smem:[#allocation3 + %s37]]
      $region56: #{_multiscale_forward.1} parent=35 // pred_fallthru
        _
    $region36: #{_multiscale_forward.1} parent=5 // pred_fallthru
      _
    %p447 = scmp.le.s32.totalorder 2, %s27
    // Predicated region
    $region57: #{_multiscale_forward.1} parent=5 // pred_check
      %p448 = pneg %p447
    $region58: #{_multiscale_forward.1} parent=5 // pred_check_branch
      %450 = sbr.rel (%p448) target = $region60
    $region59: #{_multiscale_forward.1} parent=5 // pred_region
      %s451 = ssub.s32 %s27, 2
      // Predicated region
      $region61: #{_multiscale_forward.1} parent=59 // pred_check
        %p452 = pneg %p174
      $region62: #{_multiscale_forward.1} parent=59 // pred_check_branch
        %454 = sbr.rel (%p452) target = $region64
      $region63: #{_multiscale_forward.1} parent=59 // pred_region
        %s455 = sld [smem:[#allocation3 + %s39]]
        %p456 = scmp.lt.s32.totalorder %s455, 2
        %s457 = scalar_select %p456, %s455, 2
        %p458 = scmp.lt.s32.totalorder %s38, 1
        %s459 = scalar_select %p458, %s38, 1
        %s460 = smul.addr %s457, 2
        %s461 = sadd.s32 %s459, %s460
        %s462 = smul.addr %s461, 8
        %s463 = scalar_lea.vmem %s7, %s462
      $region64: #{_multiscale_forward.1} parent=59 // pred_fallthru
        _
    $region60: #{_multiscale_forward.1} parent=5 // pred_fallthru
      _
  $region6: #{_multiscale_forward.1} parent=0 // loop_footer
    %s31 = sadd.s32 1, %s27
  $region7: #{_multiscale_forward.1} parent=0 // loop_footer_branch
    %26 = sbr.rel target = $region3
  $region8: #{_multiscale_forward.1} parent=0 // loop_exit
    _

</llo_original>
